<compile_context>
chip_gen: v5e
topology: v5e:2x2
jax: 0.10.0
libtpu: 0.0.40
codegen_flags: <defaults>
</compile_context>

<pallas_src>
import jax
import jax.numpy as jnp
import numpy as np
from jax import lax
from jax.experimental import pallas as pl
from jax.experimental.pallas import tpu as pltpu

EPS = 1e-6
_NEG_FILL = -1e30  # feature_map(_NEG_FILL) == exp(-1e30) == 0.0 exactly


def _feature_map(x):
    # elu(x) + 1 == x + 1 (x > 0) | exp(x) (x <= 0); exp runs on the EUP slot.
    return jnp.where(x > 0, x + 1.0, jnp.exp(x))


def _linear_attention_kernel(hm_ref, q_ref, k_ref, v_ref, o_ref, r_ref):
    """Grid = (N, head_groups, L_tiles); L is the innermost 'arbitrary' axis.

    The whole K-side pipeline runs once per (batch, head-group) at the first
    L tile and is cached in the (W, 2W) VMEM scratch `r_ref`:
        r[:, :W] = (Kf^T V) * head_mask          (per-head KV)
        r[:, W:] = Ksum[d] * head_mask[d, e]     (per-head normalizer matrix)
    Every L tile then needs only one (Lt, W) x (W, 2W) MXU matmul.
    """
    w = hm_ref.shape[-1]

    @pl.when(pl.program_id(2) == 0)
    def _():
        kf = _feature_map(k_ref[...])                                  # (S, W)
        # Augment V with ones so a single matmul yields both KV and the
        # lane-broadcast K row-sums (avoids any lane->sublane relayout).
        v_aug = jnp.concatenate([v_ref[...], jnp.ones_like(v_ref[...])],
                                axis=-1)                               # (S, 2W)
        r0 = lax.dot_general(kf, v_aug,
                             dimension_numbers=(((0,), (0,)), ((), ())),
                             preferred_element_type=jnp.float32)       # (W, 2W)
        hm = hm_ref[...]                                               # (W, W)
        r_ref[:, :w] = r0[:, :w] * hm     # block-diagonal per-head KV
        r_ref[:, w:] = r0[:, w:] * hm     # per-head Ksum, replicated per lane

    qf = _feature_map(q_ref[...])                                      # (Lt, W)
    both = jnp.dot(qf, r_ref[...],
                   preferred_element_type=jnp.float32)                 # (Lt, 2W)
    num = both[:, :w]
    den = both[:, w:]
    # Exact reciprocal (approx=True risks the 1e-4 tolerance).
    o_ref[...] = (num * pl.reciprocal(den + EPS)).astype(o_ref.dtype)


def _target_lane_width():
    """256 lanes (fills the 2x256^2 MXU) on v6e/v7x, 128 on older chips."""
    try:
        kind = jax.devices()[0].device_kind.lower()
    except Exception:
        return 128
    if any(v in kind for v in ("v2", "v3", "v4", "v5")):
        return 128
    return 256


def _pick_head_group(num_heads, head_dim, target_w):
    """Heads per grid step so slab lane width W = hb*D is 128-aligned,
    preferring (smallest) multiples of target_w.  None => caller must pad."""
    best = None
    for hb in range(1, num_heads + 1):
        if num_heads % hb:
            continue
        w = hb * head_dim
        if w % 128:
            continue
        key = (0 if w % target_w == 0 else 1, w)
        if best is None or key < best[0]:
            best = (key, hb)
    return None if best is None else best[1]


def _pick_l_tile(seq_len, s_len, w, max_l_tile=None,
                 vmem_budget=26 * 1024 * 1024):
    """Largest multiple-of-8 divisor of L that keeps the pipeline inside the
    scoped-VMEM budget (double-buffered q/out/K/V blocks + head mask + R)."""
    fixed = (2 * 2 * s_len * w * 4    # K, V blocks, double-buffered
             + 2 * w * w * 4          # head-mask block, double-buffered
             + 2 * w * w * 4)         # (W, 2W) scratch
    per_row = 2 * 2 * w * 4           # q + out block rows, double-buffered
    cap = max((vmem_budget - fixed) // per_row, 8)
    cap = min(cap, 2048)
    if max_l_tile is not None:
        cap = min(cap, max_l_tile)
    if seq_len <= cap:
        return seq_len
    best = None
    for t in range(8, int(cap) + 1, 8):
        if seq_len % t == 0:
            best = t
    return best if best is not None else seq_len


def linear_attention(queries, keys, values, q_mask=None, kv_mask=None,
                     max_l_tile=None):
    """Pallas linear attention.

    Args:
      queries: [N, L, H, D] float
      keys:    [N, S, H, D] float
      values:  [N, S, H, D] float
      q_mask:  [N, L] (bool or 0/1 float) or None
      kv_mask: [N, S] (bool or 0/1 float) or None
    Returns:
      queried_values: [N, L, H, D] float32
    """
    N, L, H, D = queries.shape
    S = keys.shape[1]
    HD = H * D

    # --- masks never enter the kernel ---------------------------------------
    # feature_map(_NEG_FILL) == 0 exactly, so filling masked query/key rows
    # reproduces "feature_map(x) * mask" for binary masks; V rows are zeroed.
    # The /v_length * v_length pair of the reference cancels exactly.
    if q_mask is not None:
        queries = jnp.where(q_mask.astype(bool)[:, :, None, None],
                            queries, _NEG_FILL)
    if kv_mask is not None:
        kvb = kv_mask.astype(bool)[:, :, None, None]
        keys = jnp.where(kvb, keys, _NEG_FILL)
        values = jnp.where(kvb, values, 0.0)

    queries = queries.astype(jnp.float32)
    keys = keys.astype(jnp.float32)
    values = values.astype(jnp.float32)

    # Free reshapes (contiguous last dims) instead of HBM transposes.
    q2 = queries.reshape(N, L, HD)
    k2 = keys.reshape(N, S, HD)
    v2 = values.reshape(N, S, HD)

    # --- lane-dense head grouping --------------------------------------------
    target_w = _target_lane_width()
    hb = _pick_head_group(H, D, target_w) if HD % 128 == 0 else None
    if hb is None:
        # Pad the flattened head dim to the next 128 multiple, single group.
        # Padded lanes form dummy heads whose Q/K feature map is 0 and whose V
        # is 0, so they contribute nothing and are sliced off afterwards.
        w = ((HD + 127) // 128) * 128
        pad = w - HD
        q2 = jnp.pad(q2, ((0, 0), (0, 0), (0, pad)), constant_values=_NEG_FILL)
        k2 = jnp.pad(k2, ((0, 0), (0, 0), (0, pad)), constant_values=_NEG_FILL)
        v2 = jnp.pad(v2, ((0, 0), (0, 0), (0, pad)), constant_values=0.0)
        num_groups = 1
    else:
        w = hb * D
        pad = 0
        num_groups = HD // w
    w_total = HD + pad

    # Constant block-diagonal head mask (computed once, passed as an input).
    lane_head = jnp.arange(w, dtype=jnp.int32) // D
    head_mask = (lane_head[:, None] == lane_head[None, :]).astype(jnp.float32)

    l_tile = _pick_l_tile(L, S, w, max_l_tile=max_l_tile)
    grid = (N, num_groups, L // l_tile if L % l_tile == 0 else 1)

    est = (2 * 2 * S * w * 4 + 2 * w * w * 4 + 2 * w * w * 4
           + 2 * 2 * l_tile * w * 4)
    vmem_limit = int(min(max(est + (4 << 20), 32 << 20), 48 << 20))

    out2 = pl.pallas_call(
        _linear_attention_kernel,
        out_shape=jax.ShapeDtypeStruct((N, L, w_total), jnp.float32),
        grid_spec=pltpu.PrefetchScalarGridSpec(
            num_scalar_prefetch=0,
            grid=grid,
            in_specs=[
                pl.BlockSpec((w, w), lambda n, g, l: (0, 0)),               # head mask
                pl.BlockSpec((None, l_tile, w), lambda n, g, l: (n, l, g)),  # Q
                pl.BlockSpec((None, S, w), lambda n, g, l: (n, 0, g)),       # K
                pl.BlockSpec((None, S, w), lambda n, g, l: (n, 0, g)),       # V
            ],
            out_specs=pl.BlockSpec((None, l_tile, w),
                                   lambda n, g, l: (n, l, g)),
            scratch_shapes=[pltpu.VMEM((w, 2 * w), jnp.float32)],
        ),
        compiler_params=pltpu.CompilerParams(
            dimension_semantics=("parallel", "parallel", "arbitrary"),
            vmem_limit_bytes=vmem_limit),
    )(head_mask, q2, k2, v2)

    if pad:
        out2 = out2[:, :, :HD]
    return out2.reshape(N, L, H, D)


def _reference_linear_attention(queries, keys, values, q_mask=None, kv_mask=None):
    """Pure-JAX reference mirroring the PyTorch forward."""
    Q = jax.nn.elu(queries) + 1.0
    K = jax.nn.elu(keys) + 1.0
    V = values
    if q_mask is not None:
        Q = Q * q_mask[:, :, None, None].astype(Q.dtype)
    if kv_mask is not None:
        K = K * kv_mask[:, :, None, None].astype(K.dtype)
        V = V * kv_mask[:, :, None, None].astype(V.dtype)
    v_length = V.shape[1]
    V = V / v_length
    KV = jnp.einsum('nshd,nshv->nhdv', K, V)
    Z = 1.0 / (jnp.einsum('nlhd,nhd->nlh', Q, K.sum(axis=1)) + EPS)
    return jnp.einsum('nlhd,nhdv,nlh->nlhv', Q, KV, Z) * v_length


if __name__ == "__main__":
    root = jax.random.PRNGKey(0)

    def check(out, ref):
        assert out.shape == ref.shape
        assert np.allclose(np.asarray(out), np.asarray(ref), rtol=1e-4, atol=1e-4)

    # --- small case, with and without masks (H*D = 128 -> single group) -----
    N, L, S, H, D = 2, 8, 8, 4, 32
    k1, k2_, k3, k4, k5 = jax.random.split(root, 5)
    q = jax.random.normal(k1, (N, L, H, D), jnp.float32)
    k = jax.random.normal(k2_, (N, S, H, D), jnp.float32)
    v = jax.random.normal(k3, (N, S, H, D), jnp.float32)

    out = jax.block_until_ready(linear_attention(q, k, v))
    check(out, _reference_linear_attention(q, k, v))

    q_mask = jnp.arange(L)[None, :] < jnp.array([L, L - 2])[:, None]
    kv_mask = jnp.arange(S)[None, :] < jnp.array([S - 1, S - 3])[:, None]
    out_m = jax.block_until_ready(linear_attention(q, k, v, q_mask, kv_mask))
    check(out_m, _reference_linear_attention(q, k, v, q_mask, kv_mask))

    # --- multi L-tile case: exercises the hoisted K-side scratch reuse ------
    N, L, S, H, D = 2, 128, 64, 8, 32
    ka, kb, kc = jax.random.split(k4, 3)
    q = jax.random.normal(ka, (N, L, H, D), jnp.float32)
    k = jax.random.normal(kb, (N, S, H, D), jnp.float32)
    v = jax.random.normal(kc, (N, S, H, D), jnp.float32)
    q_mask = jnp.arange(L)[None, :] < jnp.array([L, L - 16])[:, None]
    kv_mask = jnp.arange(S)[None, :] < jnp.array([S, S - 10])[:, None]
    out_t = jax.block_until_ready(
        linear_attention(q, k, v, q_mask, kv_mask, max_l_tile=32))
    check(out_t, _reference_linear_attention(q, k, v, q_mask, kv_mask))

    # --- non-128-multiple H*D: exercises the lane-dense padded fallback -----
    N, L, S, H, D = 1, 16, 16, 3, 24
    ka, kb, kc = jax.random.split(k5, 3)
    q = jax.random.normal(ka, (N, L, H, D), jnp.float32)
    k = jax.random.normal(kb, (N, S, H, D), jnp.float32)
    v = jax.random.normal(kc, (N, S, H, D), jnp.float32)
    out_p = jax.block_until_ready(linear_attention(q, k, v))
    check(out_p, _reference_linear_attention(q, k, v))

    print("KERNEL_OK")
</pallas_src>

<mosaic_0001>
module attributes {stable_mosaic.version = 11 : i64} {
  func.func @_linear_attention_kernel(%arg0: i32, %arg1: i32, %arg2: i32, %arg3: memref<128x128xf32, #tpu.memory_space<vmem>>, %arg4: memref<1x8x128xf32, #tpu.memory_space<vmem>>, %arg5: memref<1x8x128xf32, #tpu.memory_space<vmem>>, %arg6: memref<1x8x128xf32, #tpu.memory_space<vmem>>, %arg7: memref<1x8x128xf32, #tpu.memory_space<vmem>>, %arg8: memref<128x256xf32, #tpu.memory_space<vmem>>) attributes {dimension_semantics = [#tpu.dimension_semantics<parallel>, #tpu.dimension_semantics<parallel>, #tpu.dimension_semantics<arbitrary>], iteration_bounds = array<i64: 2, 1, 1>, scalar_prefetch = 0 : i64, scratch_operands = 1 : i64, tpu.core_type = #tpu.core_type<tc>, window_params = [{pipeline_mode = #tpu.pipeline_mode<synchronous>, transform_indices = @transform_0, window_bounds = array<i64: 128, 128>}, {transform_indices = @transform_1, window_bounds = array<i64: 1, 8, 128>}, {transform_indices = @transform_2, window_bounds = array<i64: 1, 8, 128>}, {transform_indices = @transform_3, window_bounds = array<i64: 1, 8, 128>}, {transform_indices = @transform_4, window_bounds = array<i64: 1, 8, 128>}]} {
    %c0_i32 = arith.constant 0 : i32
    %0 = arith.cmpi eq, %arg2, %c0_i32 : i32
    %1 = arith.extui %0 : i1 to i32
    %c0_i32_0 = arith.constant 0 : i32
    %2 = arith.cmpi ne, %1, %c0_i32_0 : i32
    scf.if %2 {
      %c0_11 = arith.constant 0 : index
      %c0_12 = arith.constant 0 : index
      %c0_13 = arith.constant 0 : index
      %22 = vector.load %arg5[%c0_11, %c0_12, %c0_13] : memref<1x8x128xf32, #tpu.memory_space<vmem>>, vector<1x8x128xf32>
      %23 = vector.shape_cast %22 : vector<1x8x128xf32> to vector<8x128xf32>
      %cst_14 = arith.constant 0.000000e+00 : f32
      %24 = vector.broadcast %cst_14 : f32 to vector<8x128xf32>
      %25 = arith.cmpf ogt, %23, %24 : vector<8x128xf32>
      %cst_15 = arith.constant 1.000000e+00 : f32
      %26 = vector.broadcast %cst_15 : f32 to vector<8x128xf32>
      %27 = arith.addf %23, %26 : vector<8x128xf32>
      %28 = math.exp %23 : vector<8x128xf32>
      %29 = arith.select %25, %27, %28 : vector<8x128xi1>, vector<8x128xf32>
      %c0_16 = arith.constant 0 : index
      %c0_17 = arith.constant 0 : index
      %c0_18 = arith.constant 0 : index
      %30 = vector.load %arg6[%c0_16, %c0_17, %c0_18] : memref<1x8x128xf32, #tpu.memory_space<vmem>>, vector<1x8x128xf32>
      %31 = vector.shape_cast %30 : vector<1x8x128xf32> to vector<8x128xf32>
      %cst_19 = arith.constant 1.000000e+00 : f32
      %32 = vector.broadcast %cst_19 : f32 to vector<8x128xf32>
      %33 = tpu.concatenate %31, %32 in 1 : vector<8x128xf32>, vector<8x128xf32> -> vector<8x256xf32>
      %cst_20 = arith.constant dense<0.000000e+00> : vector<128x256xf32>
      %34 = tpu.matmul %29, %33, %cst_20 {dimension_numbers = #tpu.dot_dimension_numbers<[0], [0], [1], [1], [0, 1, 1, 1], [], []>} : vector<8x128xf32>, vector<8x256xf32>, vector<128x256xf32> -> vector<128x256xf32>
      %c0_21 = arith.constant 0 : index
      %c0_22 = arith.constant 0 : index
      %35 = vector.load %arg3[%c0_21, %c0_22] : memref<128x128xf32, #tpu.memory_space<vmem>>, vector<128x128xf32>
      %36 = vector.extract_strided_slice %34 {offsets = [0, 0], sizes = [128, 128], strides = [1, 1]} : vector<128x256xf32> to vector<128x128xf32>
      %37 = arith.mulf %36, %35 : vector<128x128xf32>
      %c0_23 = arith.constant 0 : index
      %c0_24 = arith.constant 0 : index
      %38 = vector.load %arg8[%c0_23, %c0_24] : memref<128x256xf32, #tpu.memory_space<vmem>>, vector<128x128xf32>
      tpu.vector_store %arg8[%c0_23, %c0_24], %37 {strides = array<i32>} : memref<128x256xf32, #tpu.memory_space<vmem>>, vector<128x128xf32>,
      %39 = vector.extract_strided_slice %34 {offsets = [0, 128], sizes = [128, 128], strides = [1, 1]} : vector<128x256xf32> to vector<128x128xf32>
      %40 = arith.mulf %39, %35 : vector<128x128xf32>
      %c0_25 = arith.constant 0 : index
      %c128 = arith.constant 128 : index
      %41 = vector.load %arg8[%c0_25, %c128] : memref<128x256xf32, #tpu.memory_space<vmem>>, vector<128x128xf32>
      tpu.vector_store %arg8[%c0_25, %c128], %40 {strides = array<i32>} : memref<128x256xf32, #tpu.memory_space<vmem>>, vector<128x128xf32>,
    } else {
    }
    %c0 = arith.constant 0 : index
    %c0_1 = arith.constant 0 : index
    %c0_2 = arith.constant 0 : index
    %3 = vector.load %arg4[%c0, %c0_1, %c0_2] : memref<1x8x128xf32, #tpu.memory_space<vmem>>, vector<1x8x128xf32>
    %4 = vector.shape_cast %3 : vector<1x8x128xf32> to vector<8x128xf32>
    %cst = arith.constant 0.000000e+00 : f32
    %5 = vector.broadcast %cst : f32 to vector<8x128xf32>
    %6 = arith.cmpf ogt, %4, %5 : vector<8x128xf32>
    %cst_3 = arith.constant 1.000000e+00 : f32
    %7 = vector.broadcast %cst_3 : f32 to vector<8x128xf32>
    %8 = arith.addf %4, %7 : vector<8x128xf32>
    %9 = math.exp %4 : vector<8x128xf32>
    %10 = arith.select %6, %8, %9 : vector<8x128xi1>, vector<8x128xf32>
    %c0_4 = arith.constant 0 : index
    %c0_5 = arith.constant 0 : index
    %11 = vector.load %arg8[%c0_4, %c0_5] : memref<128x256xf32, #tpu.memory_space<vmem>>, vector<128x256xf32>
    %cst_6 = arith.constant dense<0.000000e+00> : vector<8x256xf32>
    %12 = tpu.matmul %10, %11, %cst_6 {dimension_numbers = #tpu.dot_dimension_numbers<[1], [0], [0], [1], [0, 0, 1, 1], [], []>} : vector<8x128xf32>, vector<128x256xf32>, vector<8x256xf32> -> vector<8x256xf32>
    %13 = vector.extract_strided_slice %12 {offsets = [0, 0], sizes = [8, 128], strides = [1, 1]} : vector<8x256xf32> to vector<8x128xf32>
    %14 = vector.extract_strided_slice %12 {offsets = [0, 128], sizes = [8, 128], strides = [1, 1]} : vector<8x256xf32> to vector<8x128xf32>
    %cst_7 = arith.constant 9.99999997E-7 : f32
    %15 = vector.broadcast %cst_7 : f32 to vector<8x128xf32>
    %16 = arith.addf %14, %15 : vector<8x128xf32>
    %17 = tpu.reciprocal %16 : vector<8x128xf32> -> vector<8x128xf32>
    %18 = arith.mulf %13, %17 : vector<8x128xf32>
    %c0_8 = arith.constant 0 : index
    %c0_9 = arith.constant 0 : index
    %c0_10 = arith.constant 0 : index
    %19 = vector.load %arg7[%c0_8, %c0_9, %c0_10] : memref<1x8x128xf32, #tpu.memory_space<vmem>>, vector<1x8x128xf32>
    %20 = vector.shape_cast %19 : vector<1x8x128xf32> to vector<8x128xf32>
    %21 = vector.shape_cast %18 : vector<8x128xf32> to vector<1x8x128xf32>
    tpu.vector_store %arg7[%c0_8, %c0_9, %c0_10], %21 {strides = array<i32>} : memref<1x8x128xf32, #tpu.memory_space<vmem>>, vector<1x8x128xf32>,
    return
  }
  func.func @transform_0(%arg0: i32, %arg1: i32, %arg2: i32) -> (i32, i32) {
    %c0_i32 = arith.constant 0 : i32
    %c0_i32_0 = arith.constant 0 : i32
    %c0_i32_1 = arith.constant 0 : i32
    return %c0_i32, %c0_i32_0 : i32, i32
  }
  func.func @transform_1(%arg0: i32, %arg1: i32, %arg2: i32) -> (i32, i32, i32) {
    %c0_i32 = arith.constant 0 : i32
    return %arg0, %arg2, %arg1 : i32, i32, i32
  }
  func.func @transform_2(%arg0: i32, %arg1: i32, %arg2: i32) -> (i32, i32, i32) {
    %c0_i32 = arith.constant 0 : i32
    %c0_i32_0 = arith.constant 0 : i32
    return %arg0, %c0_i32, %arg1 : i32, i32, i32
  }
  func.func @transform_3(%arg0: i32, %arg1: i32, %arg2: i32) -> (i32, i32, i32) {
    %c0_i32 = arith.constant 0 : i32
    %c0_i32_0 = arith.constant 0 : i32
    return %arg0, %c0_i32, %arg1 : i32, i32, i32
  }
  func.func @transform_4(%arg0: i32, %arg1: i32, %arg2: i32) -> (i32, i32, i32) {
    %c0_i32 = arith.constant 0 : i32
    return %arg0, %arg2, %arg1 : i32, i32, i32
  }
}

</mosaic_0001>

<llo_original>
// kernel: tpu_custom_call.1
$region0: #{tpu_custom_call.1}
  #allocation0 [shape = 'u32[]', space=smem, size = 0x4, offset = 0x4, fixed_abs, tag = 'smem constant byte address 0x4 - core index']
  #allocation1 [shape = 'u32[72,128]{1,0:T(1,128)}', space=vmem, size = 0x9000, scoped, tag = 'internal scratch']
  #allocation2 [shape = 'f32[128,256]{1,0:T(8,128)}', space=vmem, size = 0x20000, scoped, tag = 'scratch operand']
  %s0 = inlined_call_operand.hbm [shape: f32[128,128], index: 0, kind: input, shape index: {}]
  %s1 = inlined_call_operand.hbm [shape: f32[2,8,128], index: 1, kind: input, shape index: {}]
  %s2 = inlined_call_operand.hbm [shape: f32[2,8,128], index: 2, kind: input, shape index: {}]
  %s3 = inlined_call_operand.hbm [shape: f32[2,8,128], index: 3, kind: input, shape index: {}]
  %s4 = inlined_call_operand.hbm [shape: f32[2,8,128], index: 4, kind: output, shape index: {}]
  %s5 = sld [smem:[#allocation0]]
  $region69: #{tpu_custom_call.1} parent=0
    _
  %s7 = ssub.s32 1, %s5
  %s8 = scalar_select 0, %s7, %s5
  $region1: #{tpu_custom_call.1} parent=0
    #allocation3 [shape = 'u8[65536]{0}', space=vmem, size = 0x10000, scoped, tag = 'input window, operand 0, single buffered']
    #allocation4 [shape = 's32[2]{0}', space=sflag, size = 0x8, scoped, tag = 'scoped memory for tpu_custom_call.1']
    #allocation5 [shape = 's32[2]{0}', space=sflag, size = 0x8, scoped, tag = 'scoped memory for tpu_custom_call.1']
    #allocation6 [shape = 'u8[8192]{0}', space=vmem, size = 0x2000, scoped, tag = 'input window, operand 1']
    #allocation7 [shape = 's32[2]{0}', space=sflag, size = 0x8, scoped, tag = 'scoped memory for tpu_custom_call.1']
    #allocation8 [shape = 'u8[8192]{0}', space=vmem, size = 0x2000, scoped, tag = 'input window, operand 2']
    #allocation9 [shape = 'u8[8192]{0}', space=vmem, size = 0x2000, scoped, tag = 'input window, operand 3']
    #allocation10 [shape = 's32[2]{0}', space=sflag, size = 0x8, scoped, tag = 'scoped memory for tpu_custom_call.1']
    #allocation11 [shape = 'u8[8192]{0}', space=vmem, size = 0x2000, scoped, tag = 'output window, operand 0']
    %9 = vsyncpa [#allocation4], 0
    %10 = vsyncpa [#allocation7], 0
    %s11 = scalar_lea.sflag [#allocation7], 1
    %12 = vsyncpa %s11, 0
    %13 = vsyncpa [#allocation10], 0
    %s14 = scalar_lea.sflag [#allocation10], 1
    %15 = vsyncpa %s14, 0
    %16 = vsyncpa [#allocation5], 0
    %s17 = scalar_lea.sflag [#allocation5], 1
    %18 = vsyncpa %s17, 0
    loop: start=0, step=1, limit=4
    $region2: #{tpu_custom_call.1} parent=1 // loop_pre_header
      _
    $region3: #{tpu_custom_call.1} parent=1 // loop_header
      %s20 = sphi 0, %s24
      %p21 = scmp.ge.s32.totalorder %s20, 4
      %s27 = sphi 0, %s46
      %s28 = sphi 0, %s42
      %s29 = sphi 0, %s38
      %s30 = sphi 0, %s27
      %s31 = sphi 0, %s28
      %s32 = sphi 0, %s29
      %s33 = sphi 0, %s30
      %s34 = sphi 0, %s31
      %s35 = sphi 0, %s32
      %s47 = sphi 0, %s47
      %s49 = sphi 0, %s47
      %s50 = sphi 0, %s49
      %s64 = sphi 0, %s50
      %s74 = sphi 0, %s76
      %s77 = sphi 0, %s74
      %s78 = sphi 0, %s77
      %s94 = sphi 0, %s78
      %s102 = sphi 0, %s104
      %s105 = sphi 0, %s102
      %s106 = sphi 0, %s105
      %s122 = sphi 0, %s106
      %s130 = sphi 0, %s132
      %s133 = sphi 0, %s130
      %s134 = sphi 0, %s133
      %s150 = sphi 0, %s134
      %s160 = sphi 0, %s162
      %s163 = sphi 0, %s160
      %s164 = sphi 0, %s163
      %s180 = sphi 0, %s164
    $region4: #{tpu_custom_call.1} parent=1 // loop_header_branch
      %23 = sbr.rel (%p21) target = $region8
    $region5: #{tpu_custom_call.1} parent=1 // loop_body
      %s25 = ssub.s32 %s20, 1
      %s26 = ssub.s32 %s20, 2
      %s36 = sadd.s32 1, %s29
      %p37 = scmp.ge.s32.totalorder %s36, 1
      %s38 = scalar_select %p37, 0, %s36
      %s39 = sadd.s32 1, %s28
      %s40 = scalar_select %p37, %s39, %s28
      %p41 = scmp.ge.s32.totalorder %s40, 1
      %s42 = scalar_select %p41, 0, %s40
      %s43 = sadd.s32 1, %s27
      %s44 = scalar_select %p41, %s43, %s27
      %p45 = scmp.ge.s32.totalorder %s44, 2
      %s46 = scalar_select %p45, 0, %s44
      %s48 = sadd.s32 %s47, 1
      %p51 = scmp.eq.s32.totalorder %s20, 1
      %p52 = scmp.ne.s32.totalorder %s47, %s49
      %p53 = scmp.eq.s32.totalorder %s20, 0
      %p54 = por %p52, %p53
      %p55 = scmp.ne.s32.totalorder %s47, %s49
      %p56 = scmp.eq.s32.totalorder %s25, 1
      %p57 = por %p55, %p56
      %p58 = scmp.ne.s32.totalorder %s49, %s50
      %p59 = scmp.eq.s32.totalorder %s25, 0
      %p60 = por %p58, %p59
      %p61 = scmp.ne.s32.totalorder %s49, %s50
      %p62 = scmp.eq.s32.totalorder %s26, 1
      %p63 = por %p61, %p62
      %p65 = scmp.ne.s32.totalorder %s50, %s64
      %p66 = scmp.eq.s32.totalorder %s26, 0
      %p67 = por %p65, %p66
      %s68 = ssub.s32 %s27, %s46
      %s69 = ssub.s32 %s29, %s38
      %s70 = sor.u32 %s68, %s69
      %s71 = ssub.s32 %s28, %s42
      %s72 = sor.u32 %s70, %s71
      %p73 = scmp.eq.s32.totalorder %s72, 0
      %s75 = sadd.s32 %s74, 1
      %s76 = scalar_select %p73, %s74, %s75
      %p79 = pneg %p73
      %p80 = scmp.eq.s32.totalorder %s20, 1
      %p81 = por %p79, %p80
      %p82 = scmp.ne.s32.totalorder %s74, %s77
      %p83 = scmp.eq.s32.totalorder %s20, 0
      %p84 = por %p82, %p83
      %p85 = scmp.ne.s32.totalorder %s74, %s77
      %p86 = scmp.eq.s32.totalorder %s25, 1
      %p87 = por %p85, %p86
      %p88 = scmp.ne.s32.totalorder %s77, %s78
      %p89 = scmp.eq.s32.totalorder %s25, 0
      %p90 = por %p88, %p89
      %p91 = scmp.ne.s32.totalorder %s77, %s78
      %p92 = scmp.eq.s32.totalorder %s26, 1
      %p93 = por %p91, %p92
      %p95 = scmp.ne.s32.totalorder %s78, %s94
      %p96 = scmp.eq.s32.totalorder %s26, 0
      %p97 = por %p95, %p96
      %s98 = ssub.s32 %s27, %s46
      %s99 = ssub.s32 %s28, %s42
      %s100 = sor.u32 %s98, %s99
      %p101 = scmp.eq.s32.totalorder %s100, 0
      %s103 = sadd.s32 %s102, 1
      %s104 = scalar_select %p101, %s102, %s103
      %p107 = pneg %p101
      %p108 = scmp.eq.s32.totalorder %s20, 1
      %p109 = por %p107, %p108
      %p110 = scmp.ne.s32.totalorder %s102, %s105
      %p111 = scmp.eq.s32.totalorder %s20, 0
      %p112 = por %p110, %p111
      %p113 = scmp.ne.s32.totalorder %s102, %s105
      %p114 = scmp.eq.s32.totalorder %s25, 1
      %p115 = por %p113, %p114
      %p116 = scmp.ne.s32.totalorder %s105, %s106
      %p117 = scmp.eq.s32.totalorder %s25, 0
      %p118 = por %p116, %p117
      %p119 = scmp.ne.s32.totalorder %s105, %s106
      %p120 = scmp.eq.s32.totalorder %s26, 1
      %p121 = por %p119, %p120
      %p123 = scmp.ne.s32.totalorder %s106, %s122
      %p124 = scmp.eq.s32.totalorder %s26, 0
      %p125 = por %p123, %p124
      %s126 = ssub.s32 %s27, %s46
      %s127 = ssub.s32 %s28, %s42
      %s128 = sor.u32 %s126, %s127
      %p129 = scmp.eq.s32.totalorder %s128, 0
      %s131 = sadd.s32 %s130, 1
      %s132 = scalar_select %p129, %s130, %s131
      %p135 = pneg %p129
      %p136 = scmp.eq.s32.totalorder %s20, 1
      %p137 = por %p135, %p136
      %p138 = scmp.ne.s32.totalorder %s130, %s133
      %p139 = scmp.eq.s32.totalorder %s20, 0
      %p140 = por %p138, %p139
      %p141 = scmp.ne.s32.totalorder %s130, %s133
      %p142 = scmp.eq.s32.totalorder %s25, 1
      %p143 = por %p141, %p142
      %p144 = scmp.ne.s32.totalorder %s133, %s134
      %p145 = scmp.eq.s32.totalorder %s25, 0
      %p146 = por %p144, %p145
      %p147 = scmp.ne.s32.totalorder %s133, %s134
      %p148 = scmp.eq.s32.totalorder %s26, 1
      %p149 = por %p147, %p148
      %p151 = scmp.ne.s32.totalorder %s134, %s150
      %p152 = scmp.eq.s32.totalorder %s26, 0
      %p153 = por %p151, %p152
      %s154 = ssub.s32 %s27, %s46
      %s155 = ssub.s32 %s29, %s38
      %s156 = sor.u32 %s154, %s155
      %s157 = ssub.s32 %s28, %s42
      %s158 = sor.u32 %s156, %s157
      %p159 = scmp.eq.s32.totalorder %s158, 0
      %s161 = sadd.s32 %s160, 1
      %s162 = scalar_select %p159, %s160, %s161
      %p165 = pneg %p159
      %p166 = scmp.eq.s32.totalorder %s20, 1
      %p167 = por %p165, %p166
      %p168 = scmp.ne.s32.totalorder %s160, %s163
      %p169 = scmp.eq.s32.totalorder %s20, 0
      %p170 = por %p168, %p169
      %p171 = scmp.ne.s32.totalorder %s160, %s163
      %p172 = scmp.eq.s32.totalorder %s25, 1
      %p173 = por %p171, %p172
      %p174 = scmp.ne.s32.totalorder %s163, %s164
      %p175 = scmp.eq.s32.totalorder %s25, 0
      %p176 = por %p174, %p175
      %p177 = scmp.ne.s32.totalorder %s163, %s164
      %p178 = scmp.eq.s32.totalorder %s26, 1
      %p179 = por %p177, %p178
      %p181 = scmp.ne.s32.totalorder %s164, %s180
      %p182 = scmp.eq.s32.totalorder %s26, 0
      %p183 = por %p181, %p182
      %p184 = scmp.le.s32.totalorder 1, %s20
      %p185 = scmp.lt.s32.totalorder %s20, 3
      %p186 = pnand %p184, %p185
      %p187 = pneg %p186
      // Predicated region
      $region9: #{tpu_custom_call.1} parent=5 // pred_check
        _
      $region10: #{tpu_custom_call.1} parent=5 // pred_check_branch
        %189 = sbr.rel (%p186) target = $region12
      $region11: #{tpu_custom_call.1} parent=5 // pred_region
        %s190 = ssub.s32 %s20, 1
        // Predicated region
        $region13: #{tpu_custom_call.1} parent=11 // pred_check
          %p191 = pneg %p60
        $region14: #{tpu_custom_call.1} parent=11 // pred_check_branch
          %193 = sbr.rel (%p191) target = $region16
        $region15: #{tpu_custom_call.1} parent=11 // pred_region
          %195 = vsyncadd [#allocation4], 0
          %s196 = sshll.u32 %s0, 4
          %s197 = int_to_ptr.hbm [resolvable:$true] %s196
          %s198 = sshll.u32 [#allocation3], 4
          %s199 = int_to_ptr.vmem [resolvable:$true] %s198
          %204 = dma.hbm_to_vmem [thread:$0]  %s197, 2048, %s199, [#allocation4], 128, 128, 8
        $region16: #{tpu_custom_call.1} parent=11 // pred_fallthru
          _
      $region12: #{tpu_custom_call.1} parent=5 // pred_fallthru
        _
      %p205 = scmp.lt.s32.totalorder %s20, 2
      // Predicated region
      $region17: #{tpu_custom_call.1} parent=5 // pred_check
        %p206 = pneg %p205
      $region18: #{tpu_custom_call.1} parent=5 // pred_check_branch
        %208 = sbr.rel (%p206) target = $region20
      $region19: #{tpu_custom_call.1} parent=5 // pred_region
        // Predicated region
        $region21: #{tpu_custom_call.1} parent=19 // pred_check
          %p209 = pneg %p84
        $region22: #{tpu_custom_call.1} parent=19 // pred_check_branch
          %211 = sbr.rel (%p209) target = $region24
        $region23: #{tpu_custom_call.1} parent=19 // pred_region
          %s212 = sand.u32 %s20, 1
          %s213 = scalar_lea.sflag [#allocation7], %s212
          %s214 = sand.u32 %s74, 1
          %s215 = smul.addr %s214, 8
          %s216 = scalar_lea.vmem [#allocation6], %s215
          %218 = vsyncadd %s213, 0
          %s219 = sadd.s32 %s28, %s29
          %s220 = sadd.s32 %s219, %s27
          %s221 = smul.addr %s220, 8
          %s222 = scalar_lea.hbm %s1, %s221
          %s224 = sshll.u32 %s222, 4
          %s225 = int_to_ptr.hbm [resolvable:$true] %s224
          %s226 = sshll.u32 %s216, 4
          %s227 = int_to_ptr.vmem [resolvable:$true] %s226
          %229 = dma.hbm_to_vmem [thread:$0]  %s225, 128, %s227, %s213
        $region24: #{tpu_custom_call.1} parent=19 // pred_fallthru
          _
        // Predicated region
        $region25: #{tpu_custom_call.1} parent=19 // pred_check
          %p230 = pneg %p112
        $region26: #{tpu_custom_call.1} parent=19 // pred_check_branch
          %232 = sbr.rel (%p230) target = $region28
        $region27: #{tpu_custom_call.1} parent=19 // pred_region
          %s233 = sand.u32 %s20, 1
          %s234 = scalar_lea.sflag [#allocation7], %s233
          %s235 = sand.u32 %s102, 1
          %s236 = smul.addr %s235, 8
          %s237 = scalar_lea.vmem [#allocation8], %s236
          %239 = vsyncadd %s234, 0
          %s240 = sadd.s32 %s28, %s27
          %s241 = smul.addr %s240, 8
          %s242 = scalar_lea.hbm %s2, %s241
          %s244 = sshll.u32 %s242, 4
          %s245 = int_to_ptr.hbm [resolvable:$true] %s244
          %s246 = sshll.u32 %s237, 4
          %s247 = int_to_ptr.vmem [resolvable:$true] %s246
          %249 = dma.hbm_to_vmem [thread:$0]  %s245, 128, %s247, %s234
        $region28: #{tpu_custom_call.1} parent=19 // pred_fallthru
          _
        // Predicated region
        $region29: #{tpu_custom_call.1} parent=19 // pred_check
          %p250 = pneg %p140
        $region30: #{tpu_custom_call.1} parent=19 // pred_check_branch
          %252 = sbr.rel (%p250) target = $region32
        $region31: #{tpu_custom_call.1} parent=19 // pred_region
          %s253 = sand.u32 %s130, 1
          %s254 = scalar_lea.sflag [#allocation10], %s253
          %s255 = sand.u32 %s130, 1
          %s256 = smul.addr %s255, 8
          %s257 = scalar_lea.vmem [#allocation9], %s256
          %259 = vsyncadd %s254, 0
          %s260 = sadd.s32 %s28, %s27
          %s261 = smul.addr %s260, 8
          %s262 = scalar_lea.hbm %s3, %s261
          %s264 = sshll.u32 %s262, 4
          %s265 = int_to_ptr.hbm [resolvable:$true] %s264
          %s266 = sshll.u32 %s257, 4
          %s267 = int_to_ptr.vmem [resolvable:$true] %s266
          %269 = dma.hbm_to_vmem [thread:$0]  %s265, 128, %s267, %s254
        $region32: #{tpu_custom_call.1} parent=19 // pred_fallthru
          _
      $region20: #{tpu_custom_call.1} parent=5 // pred_fallthru
        _
      %p270 = scmp.le.s32.totalorder 1, %s20
      %p271 = scmp.lt.s32.totalorder %s20, 3
      %p272 = pnand %p270, %p271
      %p273 = pneg %p272
      // Predicated region
      $region33: #{tpu_custom_call.1} parent=5 // pred_check
        _
      $region34: #{tpu_custom_call.1} parent=5 // pred_check_branch
        %275 = sbr.rel (%p272) target = $region36
      $region35: #{tpu_custom_call.1} parent=5 // pred_region
        %s276 = ssub.s32 %s20, 1
        // Predicated region
        $region37: #{tpu_custom_call.1} parent=35 // pred_check
          %p277 = pneg %p60
        $region38: #{tpu_custom_call.1} parent=35 // pred_check_branch
          %279 = sbr.rel (%p277) target = $region40
        $region39: #{tpu_custom_call.1} parent=35 // pred_region
          %281 = dma.done [#allocation4], 2048
        $region40: #{tpu_custom_call.1} parent=35 // pred_fallthru
          _
        %s282 = sand.u32 %s25, 1
        %s283 = scalar_lea.sflag [#allocation7], %s282
        %s284 = sand.u32 %s77, 1
        %s285 = smul.addr %s284, 8
        %s286 = scalar_lea.vmem [#allocation6], %s285
        // Predicated region
        $region41: #{tpu_custom_call.1} parent=35 // pred_check
          %p287 = pneg %p90
        $region42: #{tpu_custom_call.1} parent=35 // pred_check_branch
          %289 = sbr.rel (%p287) target = $region44
        $region43: #{tpu_custom_call.1} parent=35 // pred_region
          %291 = dma.done %s283, 128
        $region44: #{tpu_custom_call.1} parent=35 // pred_fallthru
          _
        %s292 = sand.u32 %s25, 1
        %s293 = scalar_lea.sflag [#allocation7], %s292
        %s294 = sand.u32 %s105, 1
        %s295 = smul.addr %s294, 8
        %s296 = scalar_lea.vmem [#allocation8], %s295
        // Predicated region
        $region45: #{tpu_custom_call.1} parent=35 // pred_check
          %p297 = pneg %p118
        $region46: #{tpu_custom_call.1} parent=35 // pred_check_branch
          %299 = sbr.rel (%p297) target = $region48
        $region47: #{tpu_custom_call.1} parent=35 // pred_region
          %301 = dma.done %s293, 128
        $region48: #{tpu_custom_call.1} parent=35 // pred_fallthru
          _
        %s302 = sand.u32 %s133, 1
        %s303 = scalar_lea.sflag [#allocation10], %s302
        %s304 = sand.u32 %s133, 1
        %s305 = smul.addr %s304, 8
        %s306 = scalar_lea.vmem [#allocation9], %s305
        // Predicated region
        $region49: #{tpu_custom_call.1} parent=35 // pred_check
          %p307 = pneg %p146
        $region50: #{tpu_custom_call.1} parent=35 // pred_check_branch
          %309 = sbr.rel (%p307) target = $region52
        $region51: #{tpu_custom_call.1} parent=35 // pred_region
          %311 = dma.done %s303, 128
        $region52: #{tpu_custom_call.1} parent=35 // pred_fallthru
          _
        %p312 = pneg %p60
        %p313 = pneg %p57
        %s314 = sand.u32 %s25, 1
        %s315 = scalar_lea.sflag [#allocation7], %s314
        %s316 = sand.u32 %s77, 1
        %s317 = smul.addr %s316, 8
        %s318 = scalar_lea.vmem [#allocation6], %s317
        %p319 = pneg %p90
        %p320 = pneg %p87
        %s321 = sand.u32 %s25, 1
        %s322 = scalar_lea.sflag [#allocation7], %s321
        %s323 = sand.u32 %s105, 1
        %s324 = smul.addr %s323, 8
        %s325 = scalar_lea.vmem [#allocation8], %s324
        %p326 = pneg %p118
        %p327 = pneg %p115
        %s328 = sand.u32 %s133, 1
        %s329 = scalar_lea.sflag [#allocation10], %s328
        %s330 = sand.u32 %s133, 1
        %s331 = smul.addr %s330, 8
        %s332 = scalar_lea.vmem [#allocation9], %s331
        %p333 = pneg %p146
        %p334 = pneg %p143
        %p335 = pneg %p176
        %p336 = pneg %p173
        %s337 = sand.u32 %s163, 1
        %s338 = scalar_lea.sflag [#allocation5], %s337
        %s339 = sand.u32 %s163, 1
        %s340 = smul.addr %s339, 8
        %s341 = scalar_lea.vmem [#allocation11], %s340
        %p342 = scmp.eq.s32.totalorder %s32, 0
        // Predicated region
        $region53: #{tpu_custom_call.1} parent=35 // pred_check
          %p343 = pneg %p342
        $region54: #{tpu_custom_call.1} parent=35 // pred_check_branch
          %345 = sbr.rel (%p343) target = $region56
        $region55: #{tpu_custom_call.1} parent=35 // pred_region
          %v346 = vld [vmem:[%s296] sm:$0xff]
          %vm347 = vcmp.gt.f32.partialorder %v346, 0.0
          %v348 = vadd.f32 %v346, 1.0
          %v349 = vmul.f32 %v346, 1.442695
          %v350 = vpow.pop %v349
          %v351 = vsel %vm347, %v348, %v350
          %v352 = vld [vmem:[%s306] sm:$0xff]
          %353 = vxpose.xlu0.b32.start [1/16] %v351, 128
          %354 = vxpose.xlu0.b32.cont [2/16] 0.0, 128
          %355 = vxpose.xlu0.b32.cont [3/16] 0.0, 128
          %356 = vxpose.xlu0.b32.cont [4/16] 0.0, 128
          %357 = vxpose.xlu0.b32.cont [5/16] 0.0, 128
          %358 = vxpose.xlu0.b32.cont [6/16] 0.0, 128
          %359 = vxpose.xlu0.b32.cont [7/16] 0.0, 128
          %360 = vxpose.xlu0.b32.cont [8/16] 0.0, 128
          %361 = vxpose.xlu0.b32.cont [9/16] 0.0, 128
          %362 = vxpose.xlu0.b32.cont [10/16] 0.0, 128
          %363 = vxpose.xlu0.b32.cont [11/16] 0.0, 128
          %364 = vxpose.xlu0.b32.cont [12/16] 0.0, 128
          %365 = vxpose.xlu0.b32.cont [13/16] 0.0, 128
          %366 = vxpose.xlu0.b32.cont [14/16] 0.0, 128
          %367 = vxpose.xlu0.b32.cont [15/16] 0.0, 128
          %368 = vxpose.xlu0.b32.end [16/16] 0.0, 128
          %v369 = vpop.trf.xlu0
          %v370 = vpop.trf.xlu0
          %v371 = vpop.trf.xlu0
          %v372 = vpop.trf.xlu0
          %v373 = vpop.trf.xlu0
          %v374 = vpop.trf.xlu0
          %v375 = vpop.trf.xlu0
          %v376 = vpop.trf.xlu0
          %v377 = vpop.trf.xlu0
          %v378 = vpop.trf.xlu0
          %v379 = vpop.trf.xlu0
          %v380 = vpop.trf.xlu0
          %v381 = vpop.trf.xlu0
          %v382 = vpop.trf.xlu0
          %v383 = vpop.trf.xlu0
          %v384 = vpop.trf.xlu0
          %vm385 = vcmask 64512
          %v387 = vsel %vm385, %v369, 0
          %v390 = vsel %vm385, %v370, 0
          %v393 = vsel %vm385, %v371, 0
          %v396 = vsel %vm385, %v372, 0
          %v399 = vsel %vm385, %v373, 0
          %v402 = vsel %vm385, %v374, 0
          %v405 = vsel %vm385, %v375, 0
          %v408 = vsel %vm385, %v376, 0
          %v411 = vsel %vm385, %v377, 0
          %v414 = vsel %vm385, %v378, 0
          %v417 = vsel %vm385, %v379, 0
          %v420 = vsel %vm385, %v380, 0
          %v423 = vsel %vm385, %v381, 0
          %v426 = vsel %vm385, %v382, 0
          %v429 = vsel %vm385, %v383, 0
          %v432 = vsel %vm385, %v384, 0
          %434 = vmatpush.msra.mxu0 0.0
          %435 = vmatpush.msra.mxu0 0.0
          %436 = vmatpush.msra.mxu0 0.0
          %437 = vmatpush.msra.mxu0 0.0
          %438 = vmatpush.msra.mxu0 0.0
          %439 = vmatpush.msra.mxu0 0.0
          %440 = vmatpush.msra.mxu0 0.0
          %441 = vmatpush.msra.mxu0 0.0
          %442 = vmatpush.msra.mxu0 0.0
          %443 = vmatpush.msra.mxu0 0.0
          %444 = vmatpush.msra.mxu0 0.0
          %445 = vmatpush.msra.mxu0 0.0
          %446 = vmatpush.msra.mxu0 0.0
          %447 = vmatpush.msra.mxu0 0.0
          %448 = vmatpush.msra.mxu0 0.0
          %449 = vmatpush.msra.mxu0 %v352
          %450 = vmatmul.f32.gmra.mxu0 %v387
          %v451 = vpop.f32.mrf.mxu0
          %v452 = vadd.f32 0.0, %v451
          %453 = vmatmul.f32.gmra.mxu0 %v390
          %v454 = vpop.f32.mrf.mxu0
          %v455 = vadd.f32 0.0, %v454
          %456 = vmatmul.f32.gmra.mxu0 %v393
          %v457 = vpop.f32.mrf.mxu0
          %v458 = vadd.f32 0.0, %v457
          %459 = vmatmul.f32.gmra.mxu0 %v396
          %v460 = vpop.f32.mrf.mxu0
          %v461 = vadd.f32 0.0, %v460
          %462 = vmatmul.f32.gmra.mxu0 %v399
          %v463 = vpop.f32.mrf.mxu0
          %v464 = vadd.f32 0.0, %v463
          %465 = vmatmul.f32.gmra.mxu0 %v402
          %v466 = vpop.f32.mrf.mxu0
          %v467 = vadd.f32 0.0, %v466
          %468 = vmatmul.f32.gmra.mxu0 %v405
          %v469 = vpop.f32.mrf.mxu0
          %v470 = vadd.f32 0.0, %v469
          %471 = vmatmul.f32.gmra.mxu0 %v408
          %v472 = vpop.f32.mrf.mxu0
          %v473 = vadd.f32 0.0, %v472
          %474 = vmatmul.f32.gmra.mxu0 %v411
          %v475 = vpop.f32.mrf.mxu0
          %v476 = vadd.f32 0.0, %v475
          %477 = vmatmul.f32.gmra.mxu0 %v414
          %v478 = vpop.f32.mrf.mxu0
          %v479 = vadd.f32 0.0, %v478
          %480 = vmatmul.f32.gmra.mxu0 %v417
          %v481 = vpop.f32.mrf.mxu0
          %v482 = vadd.f32 0.0, %v481
          %483 = vmatmul.f32.gmra.mxu0 %v420
          %v484 = vpop.f32.mrf.mxu0
          %v485 = vadd.f32 0.0, %v484
          %486 = vmatmul.f32.gmra.mxu0 %v423
          %v487 = vpop.f32.mrf.mxu0
          %v488 = vadd.f32 0.0, %v487
          %489 = vmatmul.f32.gmra.mxu0 %v426
          %v490 = vpop.f32.mrf.mxu0
          %v491 = vadd.f32 0.0, %v490
          %492 = vmatmul.f32.gmra.mxu0 %v429
          %v493 = vpop.f32.mrf.mxu0
          %v494 = vadd.f32 0.0, %v493
          %495 = vmatmul.f32.gmra.mxu0 %v432
          %v496 = vpop.f32.mrf.mxu0
          %v497 = vadd.f32 0.0, %v496
          %498 = vdwg.mxu0
          %499 = vmatpush.msra.mxu0 0.0
          %500 = vmatpush.msra.mxu0 0.0
          %501 = vmatpush.msra.mxu0 0.0
          %502 = vmatpush.msra.mxu0 0.0
          %503 = vmatpush.msra.mxu0 0.0
          %504 = vmatpush.msra.mxu0 0.0
          %505 = vmatpush.msra.mxu0 0.0
          %506 = vmatpush.msra.mxu0 0.0
          %507 = vmatpush.msra.mxu0 0.0
          %508 = vmatpush.msra.mxu0 0.0
          %509 = vmatpush.msra.mxu0 0.0
          %510 = vmatpush.msra.mxu0 0.0
          %511 = vmatpush.msra.mxu0 0.0
          %512 = vmatpush.msra.mxu0 0.0
          %513 = vmatpush.msra.mxu0 0.0
          %514 = vmatpush.msra.mxu0 1.0
          %515 = vmatmul.f32.gmra.mxu0 %v387
          %v516 = vpop.f32.mrf.mxu0
          %v517 = vadd.f32 0.0, %v516
          %518 = vmatmul.f32.gmra.mxu0 %v390
          %v519 = vpop.f32.mrf.mxu0
          %v520 = vadd.f32 0.0, %v519
          %521 = vmatmul.f32.gmra.mxu0 %v393
          %v522 = vpop.f32.mrf.mxu0
          %v523 = vadd.f32 0.0, %v522
          %524 = vmatmul.f32.gmra.mxu0 %v396
          %v525 = vpop.f32.mrf.mxu0
          %v526 = vadd.f32 0.0, %v525
          %527 = vmatmul.f32.gmra.mxu0 %v399
          %v528 = vpop.f32.mrf.mxu0
          %v529 = vadd.f32 0.0, %v528
          %530 = vmatmul.f32.gmra.mxu0 %v402
          %v531 = vpop.f32.mrf.mxu0
          %v532 = vadd.f32 0.0, %v531
          %533 = vmatmul.f32.gmra.mxu0 %v405
          %v534 = vpop.f32.mrf.mxu0
          %v535 = vadd.f32 0.0, %v534
          %536 = vmatmul.f32.gmra.mxu0 %v408
          %v537 = vpop.f32.mrf.mxu0
          %v538 = vadd.f32 0.0, %v537
          %539 = vmatmul.f32.gmra.mxu0 %v411
          %v540 = vpop.f32.mrf.mxu0
          %v541 = vadd.f32 0.0, %v540
          %542 = vmatmul.f32.gmra.mxu0 %v414
          %v543 = vpop.f32.mrf.mxu0
          %v544 = vadd.f32 0.0, %v543
          %545 = vmatmul.f32.gmra.mxu0 %v417
          %v546 = vpop.f32.mrf.mxu0
          %v547 = vadd.f32 0.0, %v546
          %548 = vmatmul.f32.gmra.mxu0 %v420
          %v549 = vpop.f32.mrf.mxu0
          %v550 = vadd.f32 0.0, %v549
          %551 = vmatmul.f32.gmra.mxu0 %v423
          %v552 = vpop.f32.mrf.mxu0
          %v553 = vadd.f32 0.0, %v552
          %554 = vmatmul.f32.gmra.mxu0 %v426
          %v555 = vpop.f32.mrf.mxu0
          %v556 = vadd.f32 0.0, %v555
          %557 = vmatmul.f32.gmra.mxu0 %v429
          %v558 = vpop.f32.mrf.mxu0
          %v559 = vadd.f32 0.0, %v558
          %560 = vmatmul.f32.gmra.mxu0 %v432
          %v561 = vpop.f32.mrf.mxu0
          %v562 = vadd.f32 0.0, %v561
          %563 = vdwg.mxu0
          %v564 = vld [vmem:[#allocation3] sm:$0xff]
          %v565 = vld [vmem:[#allocation3 + $0x8] sm:$0xff]
          %v566 = vld [vmem:[#allocation3 + $0x10] sm:$0xff]
          %v567 = vld [vmem:[#allocation3 + $0x18] sm:$0xff]
          %v568 = vld [vmem:[#allocation3 + $0x20] sm:$0xff]
          %v569 = vld [vmem:[#allocation3 + $0x28] sm:$0xff]
          %v570 = vld [vmem:[#allocation3 + $0x30] sm:$0xff]
          %v571 = vld [vmem:[#allocation3 + $0x38] sm:$0xff]
          %v572 = vld [vmem:[#allocation3 + $0x40] sm:$0xff]
          %v573 = vld [vmem:[#allocation3 + $0x48] sm:$0xff]
          %v574 = vld [vmem:[#allocation3 + $0x50] sm:$0xff]
          %v575 = vld [vmem:[#allocation3 + $0x58] sm:$0xff]
          %v576 = vld [vmem:[#allocation3 + $0x60] sm:$0xff]
          %v577 = vld [vmem:[#allocation3 + $0x68] sm:$0xff]
          %v578 = vld [vmem:[#allocation3 + $0x70] sm:$0xff]
          %v579 = vld [vmem:[#allocation3 + $0x78] sm:$0xff]
          %v580 = vmul.f32 %v452, %v564
          %v581 = vmul.f32 %v455, %v565
          %v582 = vmul.f32 %v458, %v566
          %v583 = vmul.f32 %v461, %v567
          %v584 = vmul.f32 %v464, %v568
          %v585 = vmul.f32 %v467, %v569
          %v586 = vmul.f32 %v470, %v570
          %v587 = vmul.f32 %v473, %v571
          %v588 = vmul.f32 %v476, %v572
          %v589 = vmul.f32 %v479, %v573
          %v590 = vmul.f32 %v482, %v574
          %v591 = vmul.f32 %v485, %v575
          %v592 = vmul.f32 %v488, %v576
          %v593 = vmul.f32 %v491, %v577
          %v594 = vmul.f32 %v494, %v578
          %v595 = vmul.f32 %v497, %v579
          %596 = vst [vmem:[#allocation2] sm:$0xff] %v580
          %597 = vst [vmem:[#allocation2 + $0x10] sm:$0xff] %v581
          %598 = vst [vmem:[#allocation2 + $0x20] sm:$0xff] %v582
          %599 = vst [vmem:[#allocation2 + $0x30] sm:$0xff] %v583
          %600 = vst [vmem:[#allocation2 + $0x40] sm:$0xff] %v584
          %601 = vst [vmem:[#allocation2 + $0x50] sm:$0xff] %v585
          %602 = vst [vmem:[#allocation2 + $0x60] sm:$0xff] %v586
          %603 = vst [vmem:[#allocation2 + $0x70] sm:$0xff] %v587
          %604 = vst [vmem:[#allocation2 + $0x80] sm:$0xff] %v588
          %605 = vst [vmem:[#allocation2 + $0x90] sm:$0xff] %v589
          %606 = vst [vmem:[#allocation2 + $0xa0] sm:$0xff] %v590
          %607 = vst [vmem:[#allocation2 + $0xb0] sm:$0xff] %v591
          %608 = vst [vmem:[#allocation2 + $0xc0] sm:$0xff] %v592
          %609 = vst [vmem:[#allocation2 + $0xd0] sm:$0xff] %v593
          %610 = vst [vmem:[#allocation2 + $0xe0] sm:$0xff] %v594
          %611 = vst [vmem:[#allocation2 + $0xf0] sm:$0xff] %v595
          %v612 = vmul.f32 %v517, %v564
          %v613 = vmul.f32 %v520, %v565
          %v614 = vmul.f32 %v523, %v566
          %v615 = vmul.f32 %v526, %v567
          %v616 = vmul.f32 %v529, %v568
          %v617 = vmul.f32 %v532, %v569
          %v618 = vmul.f32 %v535, %v570
          %v619 = vmul.f32 %v538, %v571
          %v620 = vmul.f32 %v541, %v572
          %v621 = vmul.f32 %v544, %v573
          %v622 = vmul.f32 %v547, %v574
          %v623 = vmul.f32 %v550, %v575
          %v624 = vmul.f32 %v553, %v576
          %v625 = vmul.f32 %v556, %v577
          %v626 = vmul.f32 %v559, %v578
          %v627 = vmul.f32 %v562, %v579
          %628 = vst [vmem:[#allocation2 + $0x8] sm:$0xff] %v612
          %629 = vst [vmem:[#allocation2 + $0x18] sm:$0xff] %v613
          %630 = vst [vmem:[#allocation2 + $0x28] sm:$0xff] %v614
          %631 = vst [vmem:[#allocation2 + $0x38] sm:$0xff] %v615
          %632 = vst [vmem:[#allocation2 + $0x48] sm:$0xff] %v616
          %633 = vst [vmem:[#allocation2 + $0x58] sm:$0xff] %v617
          %634 = vst [vmem:[#allocation2 + $0x68] sm:$0xff] %v618
          %635 = vst [vmem:[#allocation2 + $0x78] sm:$0xff] %v619
          %636 = vst [vmem:[#allocation2 + $0x88] sm:$0xff] %v620
          %637 = vst [vmem:[#allocation2 + $0x98] sm:$0xff] %v621
          %638 = vst [vmem:[#allocation2 + $0xa8] sm:$0xff] %v622
          %639 = vst [vmem:[#allocation2 + $0xb8] sm:$0xff] %v623
          %640 = vst [vmem:[#allocation2 + $0xc8] sm:$0xff] %v624
          %641 = vst [vmem:[#allocation2 + $0xd8] sm:$0xff] %v625
          %642 = vst [vmem:[#allocation2 + $0xe8] sm:$0xff] %v626
          %643 = vst [vmem:[#allocation2 + $0xf8] sm:$0xff] %v627
        $region56: #{tpu_custom_call.1} parent=35 // pred_fallthru
          _
        %v644 = vld [vmem:[%s286] sm:$0xff]
        %vm645 = vcmp.gt.f32.partialorder %v644, 0.0
        %v646 = vadd.f32 %v644, 1.0
        %v647 = vmul.f32 %v644, 1.442695
        %v648 = vpow.pop %v647
        %v649 = vsel %vm645, %v646, %v648
        %v650 = vld [vmem:[#allocation2] sm:$0xff]
        %v651 = vld [vmem:[#allocation2 + $0x8] sm:$0xff]
        %v652 = vld [vmem:[#allocation2 + $0x10] sm:$0xff]
        %v653 = vld [vmem:[#allocation2 + $0x18] sm:$0xff]
        %v654 = vld [vmem:[#allocation2 + $0x20] sm:$0xff]
        %v655 = vld [vmem:[#allocation2 + $0x28] sm:$0xff]
        %v656 = vld [vmem:[#allocation2 + $0x30] sm:$0xff]
        %v657 = vld [vmem:[#allocation2 + $0x38] sm:$0xff]
        %v658 = vld [vmem:[#allocation2 + $0x40] sm:$0xff]
        %v659 = vld [vmem:[#allocation2 + $0x48] sm:$0xff]
        %v660 = vld [vmem:[#allocation2 + $0x50] sm:$0xff]
        %v661 = vld [vmem:[#allocation2 + $0x58] sm:$0xff]
        %v662 = vld [vmem:[#allocation2 + $0x60] sm:$0xff]
        %v663 = vld [vmem:[#allocation2 + $0x68] sm:$0xff]
        %v664 = vld [vmem:[#allocation2 + $0x70] sm:$0xff]
        %v665 = vld [vmem:[#allocation2 + $0x78] sm:$0xff]
        %v666 = vld [vmem:[#allocation2 + $0x80] sm:$0xff]
        %v667 = vld [vmem:[#allocation2 + $0x88] sm:$0xff]
        %v668 = vld [vmem:[#allocation2 + $0x90] sm:$0xff]
        %v669 = vld [vmem:[#allocation2 + $0x98] sm:$0xff]
        %v670 = vld [vmem:[#allocation2 + $0xa0] sm:$0xff]
        %v671 = vld [vmem:[#allocation2 + $0xa8] sm:$0xff]
        %v672 = vld [vmem:[#allocation2 + $0xb0] sm:$0xff]
        %v673 = vld [vmem:[#allocation2 + $0xb8] sm:$0xff]
        %v674 = vld [vmem:[#allocation2 + $0xc0] sm:$0xff]
        %v675 = vld [vmem:[#allocation2 + $0xc8] sm:$0xff]
        %v676 = vld [vmem:[#allocation2 + $0xd0] sm:$0xff]
        %v677 = vld [vmem:[#allocation2 + $0xd8] sm:$0xff]
        %v678 = vld [vmem:[#allocation2 + $0xe0] sm:$0xff]
        %v679 = vld [vmem:[#allocation2 + $0xe8] sm:$0xff]
        %v680 = vld [vmem:[#allocation2 + $0xf0] sm:$0xff]
        %v681 = vld [vmem:[#allocation2 + $0xf8] sm:$0xff]
        %682 = vmatpush.msra.mxu0 %v680
        %683 = vmatpush.msra.mxu0 %v678
        %684 = vmatpush.msra.mxu0 %v676
        %685 = vmatpush.msra.mxu0 %v674
        %686 = vmatpush.msra.mxu0 %v672
        %687 = vmatpush.msra.mxu0 %v670
        %688 = vmatpush.msra.mxu0 %v668
        %689 = vmatpush.msra.mxu0 %v666
        %690 = vmatpush.msra.mxu0 %v664
        %691 = vmatpush.msra.mxu0 %v662
        %692 = vmatpush.msra.mxu0 %v660
        %693 = vmatpush.msra.mxu0 %v658
        %694 = vmatpush.msra.mxu0 %v656
        %695 = vmatpush.msra.mxu0 %v654
        %696 = vmatpush.msra.mxu0 %v652
        %697 = vmatpush.msra.mxu0 %v650
        %698 = vmatmul.f32.gmra.mxu0 %v649
        %v699 = vpop.f32.mrf.mxu0
        %v700 = vadd.f32 0.0, %v699
        %701 = vdwg.mxu0
        %702 = vmatpush.msra.mxu0 %v681
        %703 = vmatpush.msra.mxu0 %v679
        %704 = vmatpush.msra.mxu0 %v677
        %705 = vmatpush.msra.mxu0 %v675
        %706 = vmatpush.msra.mxu0 %v673
        %707 = vmatpush.msra.mxu0 %v671
        %708 = vmatpush.msra.mxu0 %v669
        %709 = vmatpush.msra.mxu0 %v667
        %710 = vmatpush.msra.mxu0 %v665
        %711 = vmatpush.msra.mxu0 %v663
        %712 = vmatpush.msra.mxu0 %v661
        %713 = vmatpush.msra.mxu0 %v659
        %714 = vmatpush.msra.mxu0 %v657
        %715 = vmatpush.msra.mxu0 %v655
        %716 = vmatpush.msra.mxu0 %v653
        %717 = vmatpush.msra.mxu0 %v651
        %718 = vmatmul.f32.gmra.mxu0 %v649
        %v719 = vpop.f32.mrf.mxu0
        %v720 = vadd.f32 0.0, %v719
        %721 = vdwg.mxu0
        %v722 = vadd.f32 %v720, 1e-06
        %v723 = vrcp.pop %v722
        %v724 = vmul.f32 %v722, %v723
        %v725 = vsub.f32 1.0, %v724
        %v726 = vmul.f32 %v723, %v725
        %v727 = vadd.f32 %v723, %v726
        %vm728 = vweird.f32 %v722
        %vm729 = vweird.f32 %v723
        %vm730 = vmor %vm728, %vm729
        %v731 = vsel %vm730, %v723, %v727
        %v732 = vand.u32 2147483647, %v722
        %vm733 = vcmp.eq.f32.partialorder %v732, 8.507059e+37
        %v734 = vand.u32 %v722, 2147483648
        %v735 = vor.u32 1.1754944e-38, %v734
        %v736 = vsel %vm733, %v735, %v731
        %v737 = vmul.f32 %v700, %v736
        %738 = vst [vmem:[%s341] sm:$0xff] %v737
        %s739 = sand.u32 %s163, 1
        %s740 = scalar_lea.sflag [#allocation5], %s739
        %s741 = sand.u32 %s163, 1
        %s742 = smul.addr %s741, 8
        %s743 = scalar_lea.vmem [#allocation11], %s742
        // Predicated region
        $region57: #{tpu_custom_call.1} parent=35 // pred_check
          %p744 = pneg %p173
        $region58: #{tpu_custom_call.1} parent=35 // pred_check_branch
          %746 = sbr.rel (%p744) target = $region60
        $region59: #{tpu_custom_call.1} parent=35 // pred_region
          %748 = vsyncadd %s740, 0
          %s749 = sadd.s32 %s31, %s32
          %s750 = sadd.s32 %s749, %s30
          %s751 = smul.addr %s750, 8
          %s752 = scalar_lea.hbm %s4, %s751
          %s754 = sshll.u32 %s743, 4
          %s755 = int_to_ptr.vmem [resolvable:$true] %s754
          %s756 = sshll.u32 %s752, 4
          %s757 = int_to_ptr.hbm [resolvable:$true] %s756
          %759 = dma.vmem_to_hbm [thread:$0]  %s755, 128, %s757, %s740
        $region60: #{tpu_custom_call.1} parent=35 // pred_fallthru
          _
      $region36: #{tpu_custom_call.1} parent=5 // pred_fallthru
        _
      %p760 = scmp.le.s32.totalorder 2, %s20
      // Predicated region
      $region61: #{tpu_custom_call.1} parent=5 // pred_check
        %p761 = pneg %p760
      $region62: #{tpu_custom_call.1} parent=5 // pred_check_branch
        %763 = sbr.rel (%p761) target = $region64
      $region63: #{tpu_custom_call.1} parent=5 // pred_region
        %s764 = ssub.s32 %s20, 2
        // Predicated region
        $region65: #{tpu_custom_call.1} parent=63 // pred_check
          %p765 = pneg %p179
        $region66: #{tpu_custom_call.1} parent=63 // pred_check_branch
          %767 = sbr.rel (%p765) target = $region68
        $region67: #{tpu_custom_call.1} parent=63 // pred_region
          %s768 = sand.u32 %s164, 1
          %s769 = scalar_lea.sflag [#allocation5], %s768
          %s770 = sand.u32 %s164, 1
          %s771 = smul.addr %s770, 8
          %s772 = scalar_lea.vmem [#allocation11], %s771
          %774 = dma.done %s769, 128
        $region68: #{tpu_custom_call.1} parent=63 // pred_fallthru
          _
      $region64: #{tpu_custom_call.1} parent=5 // pred_fallthru
        _
    $region6: #{tpu_custom_call.1} parent=1 // loop_footer
      %s24 = sadd.s32 1, %s20
    $region7: #{tpu_custom_call.1} parent=1 // loop_footer_branch
      %19 = sbr.rel target = $region3
    $region8: #{tpu_custom_call.1} parent=1 // loop_exit
      _
    %775 = vsyncpa [#allocation4], 1
    %s776 = scalar_lea.sflag [#allocation4], 1
    %777 = vsyncpa %s776, 1
    %778 = vsyncpa [#allocation7], 1
    %s779 = scalar_lea.sflag [#allocation7], 1
    %780 = vsyncpa %s779, 1
    %781 = vsyncpa [#allocation10], 1
    %s782 = scalar_lea.sflag [#allocation10], 1
    %783 = vsyncpa %s782, 1
    %784 = vsyncpa [#allocation5], 1
    %s785 = scalar_lea.sflag [#allocation5], 1
    %786 = vsyncpa %s785, 1

</llo_original>
